<compile_context>
chip_gen: v7x
topology: tpu7x:2x2x1
jax: 0.10.0
libtpu: 0.0.40
codegen_flags: <defaults>
</compile_context>

<pallas_src>
import functools

import jax
import jax.numpy as jnp
from jax.experimental import pallas as pl
from jax.experimental.pallas import tpu as pltpu


def _build_band_matrix(L, kernel_size):
    """A[t, s] = (1/k) * |{j in [0,k): clip(t + j - pad, 0, L-1) == s}|.

    mean[t] = sum_s A[t, s] * x[s] reproduces exactly the replicate-padded
    AvgPool1d(kernel_size, stride=1) of the reference module.
    """
    pad = (kernel_size - 1) // 2
    t = jnp.arange(L)[:, None]                       # (L, 1)
    j = jnp.arange(kernel_size)[None, :]             # (1, k)
    src = jnp.clip(t + j - pad, 0, L - 1)            # (L, k) clamped taps
    onehot = jax.nn.one_hot(src, L, dtype=jnp.float32)   # (L, k, L)
    return onehot.sum(axis=1) * (1.0 / float(kernel_size))   # (L, L)


def _series_decomp_kernel(a_ref, x_ref, res_ref, mean_ref, *, block_b):
    # a_ref: (L, L) f32 band matrix (constant across the grid).
    # x_ref / res_ref / mean_ref: (block_b, L, C) tiles.
    a = a_ref[...]
    for b in range(block_b):                          # small static unroll
        xb = x_ref[b].astype(jnp.float32)             # single upcast per row
        mb = jnp.dot(a, xb, preferred_element_type=jnp.float32)   # MXU
        mean_ref[b] = mb.astype(mean_ref.dtype)
        res_ref[b] = (xb - mb).astype(res_ref.dtype)


def _choose_block_b(B, L, C, itemsize):
    # Target ~2 MiB per data tile; with double-buffering of 1 input + 2
    # outputs this stays well inside the 32 MiB scoped-VMEM default and
    # v7x's 64 MiB physical VMEM while amortizing per-grid-step overhead.
    tile_budget = 2 * 1024 * 1024
    per_batch = max(1, L * C * itemsize)
    bb = max(1, min(B, tile_budget // per_batch))
    if B >= 2:
        # Keep at least 2 grid iterations so both v7x TensorCores get work.
        bb = min(bb, B // 2)
    bb = max(1, bb)
    while B % bb != 0:            # avoid partial boundary blocks
        bb -= 1
    return bb


def series_decomp(x, kernel_size):
    """x: (B, L, C). Returns (res, moving_mean), both (B, L, C)."""
    assert kernel_size % 2 == 1, "series_decomp requires odd kernel_size"
    B, L, C = x.shape
    A = _build_band_matrix(L, kernel_size)            # (L, L) f32, tiny
    bb = _choose_block_b(B, L, C, x.dtype.itemsize)
    grid = (B // bb,)

    kern = functools.partial(_series_decomp_kernel, block_b=bb)
    data_spec = lambda: pl.BlockSpec((bb, L, C), lambda i: (i, 0, 0))
    a_spec = pl.BlockSpec((L, L), lambda i: (0, 0))   # resident across grid

    res, mean = pl.pallas_call(
        kern,
        out_shape=(
            jax.ShapeDtypeStruct((B, L, C), x.dtype),
            jax.ShapeDtypeStruct((B, L, C), x.dtype),
        ),
        grid=grid,
        in_specs=[a_spec, data_spec()],
        out_specs=(data_spec(), data_spec()),
        compiler_params=pltpu.CompilerParams(
            dimension_semantics=("parallel",)),
    )(A, x)
    return res, mean


def _reference(x, kernel_size):
    pad = (kernel_size - 1) // 2
    front = jnp.repeat(x[:, :1, :], pad, axis=1)
    end = jnp.repeat(x[:, -1:, :], pad, axis=1)
    xp = jnp.concatenate([front, x, end], axis=1)
    L = x.shape[1]
    mean = jnp.stack(
        [xp[:, t:t + kernel_size, :].mean(axis=1) for t in range(L)], axis=1)
    return x - mean, mean


if __name__ == "__main__":
    key = jax.random.PRNGKey(0)
    B, L, C = 2, 16, 8
    kernel_size = 5
    x = jax.random.normal(key, (B, L, C), dtype=jnp.float32)

    res, mean = series_decomp(x, kernel_size)
    jax.block_until_ready((res, mean))

    res_ref, mean_ref = _reference(x, kernel_size)
    assert jnp.allclose(mean, mean_ref, atol=1e-5, rtol=1e-5)
    assert jnp.allclose(res, res_ref, atol=1e-5, rtol=1e-5)

    print("KERNEL_OK")
</pallas_src>

<mosaic_0001>
module attributes {stable_mosaic.version = 11 : i64} {
  func.func @_series_decomp_kernel(%arg0: i32, %arg1: memref<16x16xf32, #tpu.memory_space<vmem>>, %arg2: memref<1x16x8xf32, #tpu.memory_space<vmem>>, %arg3: memref<1x16x8xf32, #tpu.memory_space<vmem>>, %arg4: memref<1x16x8xf32, #tpu.memory_space<vmem>>) attributes {dimension_semantics = [#tpu.dimension_semantics<parallel>], iteration_bounds = array<i64: 2>, scalar_prefetch = 0 : i64, scratch_operands = 0 : i64, tpu.core_type = #tpu.core_type<tc>, window_params = [{pipeline_mode = #tpu.pipeline_mode<synchronous>, transform_indices = @transform_0, window_bounds = array<i64: 16, 16>}, {transform_indices = @transform_1, window_bounds = array<i64: 1, 16, 8>}, {transform_indices = @transform_2, window_bounds = array<i64: 1, 16, 8>}, {transform_indices = @transform_3, window_bounds = array<i64: 1, 16, 8>}]} {
    %c0 = arith.constant 0 : index
    %c0_0 = arith.constant 0 : index
    %0 = vector.load %arg1[%c0, %c0_0] : memref<16x16xf32, #tpu.memory_space<vmem>>, vector<16x16xf32>
    %c0_1 = arith.constant 0 : index
    %c0_2 = arith.constant 0 : index
    %c0_3 = arith.constant 0 : index
    %1 = vector.load %arg2[%c0_1, %c0_2, %c0_3] : memref<1x16x8xf32, #tpu.memory_space<vmem>>, vector<1x16x8xf32>
    %2 = vector.shape_cast %1 : vector<1x16x8xf32> to vector<16x8xf32>
    %cst = arith.constant dense<0.000000e+00> : vector<16x8xf32>
    %3 = tpu.matmul %0, %2, %cst {dimension_numbers = #tpu.dot_dimension_numbers<[1], [0], [0], [1], [0, 0, 1, 1], [], []>} : vector<16x16xf32>, vector<16x8xf32>, vector<16x8xf32> -> vector<16x8xf32>
    %c0_4 = arith.constant 0 : index
    %c0_5 = arith.constant 0 : index
    %c0_6 = arith.constant 0 : index
    %4 = vector.load %arg4[%c0_4, %c0_5, %c0_6] : memref<1x16x8xf32, #tpu.memory_space<vmem>>, vector<1x16x8xf32>
    %5 = vector.shape_cast %4 : vector<1x16x8xf32> to vector<16x8xf32>
    %6 = vector.shape_cast %3 : vector<16x8xf32> to vector<1x16x8xf32>
    tpu.vector_store %arg4[%c0_4, %c0_5, %c0_6], %6 {strides = array<i32>} : memref<1x16x8xf32, #tpu.memory_space<vmem>>, vector<1x16x8xf32>,
    %7 = arith.subf %2, %3 : vector<16x8xf32>
    %c0_7 = arith.constant 0 : index
    %c0_8 = arith.constant 0 : index
    %c0_9 = arith.constant 0 : index
    %8 = vector.load %arg3[%c0_7, %c0_8, %c0_9] : memref<1x16x8xf32, #tpu.memory_space<vmem>>, vector<1x16x8xf32>
    %9 = vector.shape_cast %8 : vector<1x16x8xf32> to vector<16x8xf32>
    %10 = vector.shape_cast %7 : vector<16x8xf32> to vector<1x16x8xf32>
    tpu.vector_store %arg3[%c0_7, %c0_8, %c0_9], %10 {strides = array<i32>} : memref<1x16x8xf32, #tpu.memory_space<vmem>>, vector<1x16x8xf32>,
    return
  }
  func.func @transform_0(%arg0: i32) -> (i32, i32) {
    %c0_i32 = arith.constant 0 : i32
    %c0_i32_0 = arith.constant 0 : i32
    %c0_i32_1 = arith.constant 0 : i32
    return %c0_i32, %c0_i32_0 : i32, i32
  }
  func.func @transform_1(%arg0: i32) -> (i32, i32, i32) {
    %c0_i32 = arith.constant 0 : i32
    %c0_i32_0 = arith.constant 0 : i32
    %c0_i32_1 = arith.constant 0 : i32
    return %arg0, %c0_i32, %c0_i32_0 : i32, i32, i32
  }
  func.func @transform_2(%arg0: i32) -> (i32, i32, i32) {
    %c0_i32 = arith.constant 0 : i32
    %c0_i32_0 = arith.constant 0 : i32
    %c0_i32_1 = arith.constant 0 : i32
    return %arg0, %c0_i32, %c0_i32_0 : i32, i32, i32
  }
  func.func @transform_3(%arg0: i32) -> (i32, i32, i32) {
    %c0_i32 = arith.constant 0 : i32
    %c0_i32_0 = arith.constant 0 : i32
    %c0_i32_1 = arith.constant 0 : i32
    return %arg0, %c0_i32, %c0_i32_0 : i32, i32, i32
  }
}

</mosaic_0001>

<llo_original>
// kernel: tpu_custom_call.1
$region0: #{tpu_custom_call.1}
  #allocation0 [shape = 'u32[]', space=smem, size = 0x4, offset = 0x4, fixed_abs, tag = 'smem constant byte address 0x4 - core index']
  #allocation1 [shape = 'u32[144,128]{1,0:T(1,128)}', space=vmem, size = 0x12000, scoped, tag = 'internal scratch']
  %s0 = inlined_call_operand.vmem [shape: f32[16,16], index: 0, kind: input, shape index: {}]
  %s1 = inlined_call_operand.vmem [shape: f32[2,16,8], index: 1, kind: input, shape index: {}]
  %s2 = inlined_call_operand.vmem [shape: f32[2,16,8], index: 2, kind: output, shape index: {0}]
  %s3 = inlined_call_operand.vmem [shape: f32[2,16,8], index: 3, kind: output, shape index: {1}]
  %4 = xla_tuple %s2, %s3
  %s5 = sld [smem:[#allocation0]]
  $region49: #{tpu_custom_call.1} parent=0
    _
  %s7 = ssub.s32 1, %s5
  %s8 = scalar_select 0, %s7, %s5
  loop: start=0, step=1, limit=4
  $region2: #{tpu_custom_call.1} parent=0 // loop_pre_header
    _
  $region3: #{tpu_custom_call.1} parent=0 // loop_header
    %s10 = sphi 0, %s14
    %p11 = scmp.ge.s32.totalorder %s10, 4
    %s18 = sphi 0, %s18
    %s20 = sphi 0, %s18
    %s21 = sphi 0, %s20
    %s35 = sphi 0, %s21
    %s41 = sphi 0, %s43
    %s44 = sphi 0, %s41
    %s45 = sphi 0, %s44
    %s61 = sphi 0, %s45
    %s67 = sphi 0, %s69
    %s70 = sphi 0, %s67
    %s71 = sphi 0, %s70
    %s87 = sphi 0, %s71
    %s93 = sphi 0, %s95
    %s96 = sphi 0, %s93
    %s97 = sphi 0, %s96
    %s113 = sphi 0, %s97
  $region4: #{tpu_custom_call.1} parent=0 // loop_header_branch
    %13 = sbr.rel (%p11) target = $region8
  $region5: #{tpu_custom_call.1} parent=0 // loop_body
    %s15 = ssub.s32 %s10, 1
    %s16 = ssub.s32 %s10, 2
    %s17 = sadd.s32 %s10, 1
    %s19 = sadd.s32 %s18, 1
    %p22 = scmp.eq.s32.totalorder %s10, 1
    %p23 = scmp.ne.s32.totalorder %s18, %s20
    %p24 = scmp.eq.s32.totalorder %s10, 0
    %p25 = por %p23, %p24
    %p26 = scmp.ne.s32.totalorder %s18, %s20
    %p27 = scmp.eq.s32.totalorder %s15, 1
    %p28 = por %p26, %p27
    %p29 = scmp.ne.s32.totalorder %s20, %s21
    %p30 = scmp.eq.s32.totalorder %s15, 0
    %p31 = por %p29, %p30
    %p32 = scmp.ne.s32.totalorder %s20, %s21
    %p33 = scmp.eq.s32.totalorder %s16, 1
    %p34 = por %p32, %p33
    %p36 = scmp.ne.s32.totalorder %s21, %s35
    %p37 = scmp.eq.s32.totalorder %s16, 0
    %p38 = por %p36, %p37
    %s39 = ssub.s32 %s10, %s17
    %p40 = scmp.eq.s32.totalorder %s39, 0
    %s42 = sadd.s32 %s41, 1
    %s43 = scalar_select %p40, %s41, %s42
    %p46 = pneg %p40
    %p47 = scmp.eq.s32.totalorder %s10, 1
    %p48 = por %p46, %p47
    %p49 = scmp.ne.s32.totalorder %s41, %s44
    %p50 = scmp.eq.s32.totalorder %s10, 0
    %p51 = por %p49, %p50
    %p52 = scmp.ne.s32.totalorder %s41, %s44
    %p53 = scmp.eq.s32.totalorder %s15, 1
    %p54 = por %p52, %p53
    %p55 = scmp.ne.s32.totalorder %s44, %s45
    %p56 = scmp.eq.s32.totalorder %s15, 0
    %p57 = por %p55, %p56
    %p58 = scmp.ne.s32.totalorder %s44, %s45
    %p59 = scmp.eq.s32.totalorder %s16, 1
    %p60 = por %p58, %p59
    %p62 = scmp.ne.s32.totalorder %s45, %s61
    %p63 = scmp.eq.s32.totalorder %s16, 0
    %p64 = por %p62, %p63
    %s65 = ssub.s32 %s10, %s17
    %p66 = scmp.eq.s32.totalorder %s65, 0
    %s68 = sadd.s32 %s67, 1
    %s69 = scalar_select %p66, %s67, %s68
    %p72 = pneg %p66
    %p73 = scmp.eq.s32.totalorder %s10, 1
    %p74 = por %p72, %p73
    %p75 = scmp.ne.s32.totalorder %s67, %s70
    %p76 = scmp.eq.s32.totalorder %s10, 0
    %p77 = por %p75, %p76
    %p78 = scmp.ne.s32.totalorder %s67, %s70
    %p79 = scmp.eq.s32.totalorder %s15, 1
    %p80 = por %p78, %p79
    %p81 = scmp.ne.s32.totalorder %s70, %s71
    %p82 = scmp.eq.s32.totalorder %s15, 0
    %p83 = por %p81, %p82
    %p84 = scmp.ne.s32.totalorder %s70, %s71
    %p85 = scmp.eq.s32.totalorder %s16, 1
    %p86 = por %p84, %p85
    %p88 = scmp.ne.s32.totalorder %s71, %s87
    %p89 = scmp.eq.s32.totalorder %s16, 0
    %p90 = por %p88, %p89
    %s91 = ssub.s32 %s10, %s17
    %p92 = scmp.eq.s32.totalorder %s91, 0
    %s94 = sadd.s32 %s93, 1
    %s95 = scalar_select %p92, %s93, %s94
    %p98 = pneg %p92
    %p99 = scmp.eq.s32.totalorder %s10, 1
    %p100 = por %p98, %p99
    %p101 = scmp.ne.s32.totalorder %s93, %s96
    %p102 = scmp.eq.s32.totalorder %s10, 0
    %p103 = por %p101, %p102
    %p104 = scmp.ne.s32.totalorder %s93, %s96
    %p105 = scmp.eq.s32.totalorder %s15, 1
    %p106 = por %p104, %p105
    %p107 = scmp.ne.s32.totalorder %s96, %s97
    %p108 = scmp.eq.s32.totalorder %s15, 0
    %p109 = por %p107, %p108
    %p110 = scmp.ne.s32.totalorder %s96, %s97
    %p111 = scmp.eq.s32.totalorder %s16, 1
    %p112 = por %p110, %p111
    %p114 = scmp.ne.s32.totalorder %s97, %s113
    %p115 = scmp.eq.s32.totalorder %s16, 0
    %p116 = por %p114, %p115
    %p117 = scmp.le.s32.totalorder 1, %s10
    %p118 = scmp.lt.s32.totalorder %s10, 3
    %p119 = pnand %p117, %p118
    %p120 = pneg %p119
    // Predicated region
    $region9: #{tpu_custom_call.1} parent=5 // pred_check
      _
    $region10: #{tpu_custom_call.1} parent=5 // pred_check_branch
      %122 = sbr.rel (%p119) target = $region12
    $region11: #{tpu_custom_call.1} parent=5 // pred_region
      %s123 = ssub.s32 %s10, 1
      // Predicated region
      $region13: #{tpu_custom_call.1} parent=11 // pred_check
        %p124 = pneg %p31
      $region14: #{tpu_custom_call.1} parent=11 // pred_check_branch
        %126 = sbr.rel (%p124) target = $region16
      $region15: #{tpu_custom_call.1} parent=11 // pred_region
        _
      $region16: #{tpu_custom_call.1} parent=11 // pred_fallthru
        _
    $region12: #{tpu_custom_call.1} parent=5 // pred_fallthru
      _
    %p127 = scmp.lt.s32.totalorder %s10, 2
    // Predicated region
    $region17: #{tpu_custom_call.1} parent=5 // pred_check
      %p128 = pneg %p127
    $region18: #{tpu_custom_call.1} parent=5 // pred_check_branch
      %130 = sbr.rel (%p128) target = $region20
    $region19: #{tpu_custom_call.1} parent=5 // pred_region
      // Predicated region
      $region21: #{tpu_custom_call.1} parent=19 // pred_check
        %p131 = pneg %p51
      $region22: #{tpu_custom_call.1} parent=19 // pred_check_branch
        %133 = sbr.rel (%p131) target = $region24
      $region23: #{tpu_custom_call.1} parent=19 // pred_region
        %p134 = scmp.lt.s32.totalorder %s10, 1
        %s135 = scalar_select %p134, %s10, 1
        %s136 = smul.addr %s135, 2
        %s137 = smul.addr %s136, 8
        %s138 = scalar_lea.vmem %s1, %s137
      $region24: #{tpu_custom_call.1} parent=19 // pred_fallthru
        _
    $region20: #{tpu_custom_call.1} parent=5 // pred_fallthru
      _
    %p139 = scmp.le.s32.totalorder 1, %s10
    %p140 = scmp.lt.s32.totalorder %s10, 3
    %p141 = pnand %p139, %p140
    %p142 = pneg %p141
    // Predicated region
    $region25: #{tpu_custom_call.1} parent=5 // pred_check
      _
    $region26: #{tpu_custom_call.1} parent=5 // pred_check_branch
      %144 = sbr.rel (%p141) target = $region28
    $region27: #{tpu_custom_call.1} parent=5 // pred_region
      %s145 = ssub.s32 %s10, 1
      %p146 = pneg %p31
      %p147 = pneg %p28
      %p148 = scmp.lt.s32.totalorder %s15, 1
      %s149 = scalar_select %p148, %s15, 1
      %s150 = smul.addr %s149, 2
      %s151 = smul.addr %s150, 8
      %s152 = scalar_lea.vmem %s1, %s151
      %p153 = pneg %p57
      %p154 = pneg %p54
      %p155 = pneg %p83
      %p156 = pneg %p80
      %p157 = scmp.lt.s32.totalorder %s15, 1
      %s158 = scalar_select %p157, %s15, 1
      %s159 = smul.addr %s158, 2
      %s160 = smul.addr %s159, 8
      %s161 = scalar_lea.vmem %s2, %s160
      %p162 = pneg %p109
      %p163 = pneg %p106
      %p164 = scmp.lt.s32.totalorder %s15, 1
      %s165 = scalar_select %p164, %s15, 1
      %s166 = smul.addr %s165, 2
      %s167 = smul.addr %s166, 8
      %s168 = scalar_lea.vmem %s3, %s167
      %p169 = scmp.lt.s32.totalorder %s15, 1
      %s170 = scalar_select %p169, %s15, 1
      %s171 = smul.addr %s170, 2
      %s172 = smul.addr %s171, 8
      %s173 = scalar_lea.vmem %s1, %s172
      %p174 = scmp.lt.s32.totalorder %s15, 1
      %s175 = scalar_select %p174, %s15, 1
      %s176 = smul.addr %s175, 2
      %s177 = smul.addr %s176, 8
      %s178 = scalar_lea.vmem %s2, %s177
      %p179 = scmp.lt.s32.totalorder %s15, 1
      %s180 = scalar_select %p179, %s15, 1
      %s181 = smul.addr %s180, 2
      %s182 = smul.addr %s181, 8
      %s183 = scalar_lea.vmem %s3, %s182
      %v184 = vld [vmem:[%s0] sm:$0xff]
      %v185 = vld [vmem:[%s0 + $0x8] sm:$0xff]
      %v186 = vld [vmem:[%s173] sm:$0xff]
      %v187 = vld [vmem:[%s173 + $0x8] sm:$0xff]
      %vm188 = vcmask 130048
      %v190 = vsel %vm188, %v184, 0
      %v193 = vsel %vm188, %v185, 0
      %195 = vmatprep.subr.mxu0 0.0
      %196 = vmatpush1.msra.mxu0 %v186
      %197 = vmatprep.subr.mxu0 0.0
      %198 = vmatpush1.msra.mxu0 %v187
      %199 = vmatprep.subr.mxu0 0.0
      %200 = vmatpush1.msra.mxu0 0.0
      %201 = vmatprep.subr.mxu0 0.0
      %202 = vmatpush1.msra.mxu0 0.0
      %203 = vmatprep.subr.mxu0 0.0
      %204 = vmatpush1.msra.mxu0 0.0
      %205 = vmatprep.subr.mxu0 0.0
      %206 = vmatpush1.msra.mxu0 0.0
      %207 = vmatprep.subr.mxu0 0.0
      %208 = vmatpush1.msra.mxu0 0.0
      %209 = vmatprep.subr.mxu0 0.0
      %210 = vmatpush1.msra.mxu0 0.0
      %211 = vmatprep.subr.mxu0 0.0
      %212 = vmatpush1.msra.mxu0 0.0
      %213 = vmatprep.subr.mxu0 0.0
      %214 = vmatpush1.msra.mxu0 0.0
      %215 = vmatprep.subr.mxu0 0.0
      %216 = vmatpush1.msra.mxu0 0.0
      %217 = vmatprep.subr.mxu0 0.0
      %218 = vmatpush1.msra.mxu0 0.0
      %219 = vmatprep.subr.mxu0 0.0
      %220 = vmatpush1.msra.mxu0 0.0
      %221 = vmatprep.subr.mxu0 0.0
      %222 = vmatpush1.msra.mxu0 0.0
      %223 = vmatprep.subr.mxu0 0.0
      %224 = vmatpush1.msra.mxu0 0.0
      %225 = vmatprep.subr.mxu0 0.0
      %226 = vmatpush1.msra.mxu0 0.0
      %227 = vmatprep.subr.mxu0 0.0
      %228 = vmatpush1.msra.mxu0 0.0
      %229 = vmatprep.subr.mxu0 0.0
      %230 = vmatpush1.msra.mxu0 0.0
      %231 = vmatprep.subr.mxu0 0.0
      %232 = vmatpush1.msra.mxu0 0.0
      %233 = vmatprep.subr.mxu0 0.0
      %234 = vmatpush1.msra.mxu0 0.0
      %235 = vmatprep.subr.mxu0 0.0
      %236 = vmatpush1.msra.mxu0 0.0
      %237 = vmatprep.subr.mxu0 0.0
      %238 = vmatpush1.msra.mxu0 0.0
      %239 = vmatprep.subr.mxu0 0.0
      %240 = vmatpush1.msra.mxu0 0.0
      %241 = vmatprep.subr.mxu0 0.0
      %242 = vmatpush1.msra.mxu0 0.0
      %243 = vmatprep.subr.mxu0 0.0
      %244 = vmatpush1.msra.mxu0 0.0
      %245 = vmatprep.subr.mxu0 0.0
      %246 = vmatpush1.msra.mxu0 0.0
      %247 = vmatprep.subr.mxu0 0.0
      %248 = vmatpush1.msra.mxu0 0.0
      %249 = vmatprep.subr.mxu0 0.0
      %250 = vmatpush1.msra.mxu0 0.0
      %251 = vmatprep.subr.mxu0 0.0
      %252 = vmatpush1.msra.mxu0 0.0
      %253 = vmatprep.subr.mxu0 0.0
      %254 = vmatpush1.msra.mxu0 0.0
      %255 = vmatprep.subr.mxu0 0.0
      %256 = vmatpush1.msra.mxu0 0.0
      %257 = vmatprep.subr.mxu0 0.0
      %258 = vmatpush1.msra.mxu0 0.0
      %259 = vmatprep.mubr.f32.mxu0 0.0
      %260 = vmatmul.mubr.f32.gmra.mrb[0].mxu0 %v190
      %v261 = vpop.f32.mrb[0].mxu0
      %v262 = vadd.f32 0.0, %v261
      %v263 = vpop.f32.mrb[0].mxu0
      %264 = vmatprep.mubr.f32.mxu0 0.0
      %265 = vmatmul.mubr.f32.gmra.mrb[0].mxu0 %v193
      %v266 = vpop.f32.mrb[0].mxu0
      %v267 = vadd.f32 0.0, %v266
      %v268 = vpop.f32.mrb[0].mxu0
      %269 = vdwg.mxu0
      %vm270 = vcmask 64512
      %271 = vst.msk [vmem:[%s183] sm:$0xff] %vm270, %v262
      %272 = vst.msk [vmem:[%s183 + $0x8] sm:$0xff] %vm270, %v267
      %v273 = vsub.f32 %v186, %v262
      %v274 = vsub.f32 %v187, %v267
      %275 = vst.msk [vmem:[%s178] sm:$0xff] %vm270, %v273
      %276 = vst.msk [vmem:[%s178 + $0x8] sm:$0xff] %vm270, %v274
      %p277 = scmp.lt.s32.totalorder %s15, 1
      %s278 = scalar_select %p277, %s15, 1
      %s279 = smul.addr %s278, 2
      %s280 = smul.addr %s279, 8
      %s281 = scalar_lea.vmem %s2, %s280
      %p282 = scmp.lt.s32.totalorder %s15, 1
      %s283 = scalar_select %p282, %s15, 1
      %s284 = smul.addr %s283, 2
      %s285 = smul.addr %s284, 8
      %s286 = scalar_lea.vmem %s3, %s285
      // Predicated region
      $region29: #{tpu_custom_call.1} parent=27 // pred_check
        %p287 = pneg %p80
      $region30: #{tpu_custom_call.1} parent=27 // pred_check_branch
        %289 = sbr.rel (%p287) target = $region32
      $region31: #{tpu_custom_call.1} parent=27 // pred_region
        _
      $region32: #{tpu_custom_call.1} parent=27 // pred_fallthru
        _
      // Predicated region
      $region33: #{tpu_custom_call.1} parent=27 // pred_check
        %p290 = pneg %p106
      $region34: #{tpu_custom_call.1} parent=27 // pred_check_branch
        %292 = sbr.rel (%p290) target = $region36
      $region35: #{tpu_custom_call.1} parent=27 // pred_region
        _
      $region36: #{tpu_custom_call.1} parent=27 // pred_fallthru
        _
    $region28: #{tpu_custom_call.1} parent=5 // pred_fallthru
      _
    %p293 = scmp.le.s32.totalorder 2, %s10
    // Predicated region
    $region37: #{tpu_custom_call.1} parent=5 // pred_check
      %p294 = pneg %p293
    $region38: #{tpu_custom_call.1} parent=5 // pred_check_branch
      %296 = sbr.rel (%p294) target = $region40
    $region39: #{tpu_custom_call.1} parent=5 // pred_region
      %s297 = ssub.s32 %s10, 2
      // Predicated region
      $region41: #{tpu_custom_call.1} parent=39 // pred_check
        %p298 = pneg %p86
      $region42: #{tpu_custom_call.1} parent=39 // pred_check_branch
        %300 = sbr.rel (%p298) target = $region44
      $region43: #{tpu_custom_call.1} parent=39 // pred_region
        %p301 = scmp.lt.s32.totalorder %s16, 1
        %s302 = scalar_select %p301, %s16, 1
        %s303 = smul.addr %s302, 2
        %s304 = smul.addr %s303, 8
        %s305 = scalar_lea.vmem %s2, %s304
      $region44: #{tpu_custom_call.1} parent=39 // pred_fallthru
        _
      // Predicated region
      $region45: #{tpu_custom_call.1} parent=39 // pred_check
        %p306 = pneg %p112
      $region46: #{tpu_custom_call.1} parent=39 // pred_check_branch
        %308 = sbr.rel (%p306) target = $region48
      $region47: #{tpu_custom_call.1} parent=39 // pred_region
        %p309 = scmp.lt.s32.totalorder %s16, 1
        %s310 = scalar_select %p309, %s16, 1
        %s311 = smul.addr %s310, 2
        %s312 = smul.addr %s311, 8
        %s313 = scalar_lea.vmem %s3, %s312
      $region48: #{tpu_custom_call.1} parent=39 // pred_fallthru
        _
    $region40: #{tpu_custom_call.1} parent=5 // pred_fallthru
      _
  $region6: #{tpu_custom_call.1} parent=0 // loop_footer
    %s14 = sadd.s32 1, %s10
  $region7: #{tpu_custom_call.1} parent=0 // loop_footer_branch
    %9 = sbr.rel target = $region3
  $region8: #{tpu_custom_call.1} parent=0 // loop_exit
    _

</llo_original>
